<compile_context>
chip_gen: v7x
topology: tpu7x:2x2x1
jax: 0.10.0
libtpu: 0.0.40
codegen_flags: <defaults>
</compile_context>

<pallas_src>
import functools

import numpy as np
import jax
import jax.numpy as jnp
from jax.experimental import pallas as pl
from jax.experimental.pallas import tpu as pltpu

K = 5       # conv kernel size
PAD = 2     # conv padding
EPS = 1e-5  # BatchNorm eps (PyTorch default)


def _res_block_kernel(x_ref, w1_ref, b1_ref, w2_ref, b2_ref, out_ref, *, seg_len):
    C, M = out_ref.shape
    x = x_ref[...]                                   # (C, M) f32 activations

    # Lane-only boundary masks, computed once and reused by both convs.
    # lpos[m] = position of lane m inside its own length-`seg_len` sample.
    lpos = jax.lax.broadcasted_iota(jnp.int32, (1, M), 1)
    if M != seg_len:
        lpos = lpos % seg_len
    fmask = {
        s: ((lpos + s >= 0) & (lpos + s < seg_len)).astype(jnp.float32)
        for s in range(-PAD, PAD + 1) if s != 0
    }

    def stack_taps(a):
        # (C, M) f32 -> (K*C, M) bf16 stacked RHS.  Rows [k*C:(k+1)*C] hold `a`
        # shifted by (k - PAD) lanes; lanes whose source index falls outside the
        # sample segment are zeroed (== conv zero padding).  pltpu.roll keeps
        # the shift on the XLU; the (1, M) mask multiply broadcasts on the VPU.
        parts = []
        for k in range(K):
            s = k - PAD
            if s == 0:
                parts.append(a)
            else:
                rolled = pltpu.roll(a, shift=(-s) % M, axis=1)
                parts.append(rolled * fmask[s])
        return jnp.concatenate(parts, axis=0).astype(jnp.bfloat16)

    # ---- Conv1d #1 (BN1 scale folded into w1) + BN1 bias + ReLU: one matmul.
    h = jnp.dot(w1_ref[...], stack_taps(x), preferred_element_type=jnp.float32)
    h = jnp.maximum(h + b1_ref[...], 0.0)

    # ---- Conv1d #2 (conv2 bias + BN2 folded into w2 / b2): one matmul.
    y = jnp.dot(w2_ref[...], stack_taps(h), preferred_element_type=jnp.float32)

    # ---- residual add (all f32).
    out_ref[...] = (x + y + b2_ref[...]).astype(out_ref.dtype)


def _tpu_generation():
    """Return (vmem_limit_bytes, need_two_grid_steps) for the local TPU."""
    vmem_limit = 96 * 1024 * 1024          # v5e/v6e/v4/v5p: 128 MiB physical, 1 TC
    need_two_steps = False
    try:
        kind = jax.devices()[0].device_kind.lower()
    except Exception:
        kind = ""
    if "v2" in kind or "v3" in kind:       # older parts: much smaller VMEM
        vmem_limit = 16 * 1024 * 1024
    elif "7" in kind:                      # v7x: 64 MiB physical VMEM, 2 TCs
        vmem_limit = 48 * 1024 * 1024
        need_two_steps = True
    return vmem_limit, need_two_steps


def _pick_samples_per_block(n, length, c, vmem_budget, need_two_steps,
                            lane_target=2048):
    """Samples regrouped per grid step.

    Largest nb (divisor of n) whose (C, nb*L) slab fits the per-step VMEM
    estimate; nb=1 (regroup skipped) when L is already lane-dense.
    """
    if length >= 128:
        return 1                                   # skip the regroup round trip
    bytes_per_lane = 64 * c                        # conservative per-lane bytes
    max_m = max(length, vmem_budget // max(bytes_per_lane, 1))
    max_m = min(max_m, max(length, lane_target))
    best = 1
    for d in range(2, n + 1):
        if n % d:
            continue
        if need_two_steps and n // d < 2:          # keep both v7x TCs fed
            continue
        if d * length <= max_m:
            best = d
    return best


def residule_block_forward(x, params):
    """x: (N, C, L) float32; params: conv/BN parameters (inference-mode BN)."""
    w1, w2, cb2 = params["w1"], params["w2"], params["cb2"]
    g1, be1, m1, v1 = params["g1"], params["be1"], params["m1"], params["v1"]
    g2, be2, m2, v2 = params["g2"], params["be2"], params["m2"], params["v2"]

    N, C, L = x.shape
    vmem_limit, need_two_steps = _tpu_generation()
    nb = _pick_samples_per_block(N, L, C, (vmem_limit * 3) // 4, need_two_steps)
    G, M = N // nb, nb * L

    x = x.astype(jnp.float32)
    if nb == 1:
        xr = x                                     # no extra HBM round trip
    else:
        # Lane-dense layout: (N, C, L) -> (G, C, nb*L).
        xr = x.reshape(G, nb, C, L).transpose(0, 2, 1, 3).reshape(G, C, M)

    # Fold BatchNorms (inference) into conv weights / per-channel biases, and
    # pre-stack the K taps along the contraction axis: (out, in, k) -> (out, k*in).
    inv1 = (g1 / jnp.sqrt(v1 + EPS)).astype(jnp.float32)
    inv2 = (g2 / jnp.sqrt(v2 + EPS)).astype(jnp.float32)
    w1f = w1.astype(jnp.float32) * inv1.reshape(C, 1, 1)
    w1f = jnp.transpose(w1f, (0, 2, 1)).reshape(C, K * C).astype(jnp.bfloat16)
    w2f = w2.astype(jnp.float32) * inv2.reshape(C, 1, 1)
    w2f = jnp.transpose(w2f, (0, 2, 1)).reshape(C, K * C).astype(jnp.bfloat16)
    b1 = (be1 - m1 * inv1).reshape(C, 1).astype(jnp.float32)
    b2 = (inv2 * (cb2 - m2) + be2).reshape(C, 1).astype(jnp.float32)

    kernel = functools.partial(_res_block_kernel, seg_len=L)
    out_r = pl.pallas_call(
        kernel,
        out_shape=jax.ShapeDtypeStruct((G, C, M), jnp.float32),
        grid_spec=pltpu.PrefetchScalarGridSpec(
            num_scalar_prefetch=0,
            grid=(G,),
            in_specs=[
                pl.BlockSpec((None, C, M), lambda g: (g, 0, 0)),  # activations
                pl.BlockSpec((C, K * C), lambda g: (0, 0)),       # w1 (resident)
                pl.BlockSpec((C, 1), lambda g: (0, 0)),           # b1
                pl.BlockSpec((C, K * C), lambda g: (0, 0)),       # w2 (resident)
                pl.BlockSpec((C, 1), lambda g: (0, 0)),           # b2 (+conv2 bias)
            ],
            out_specs=pl.BlockSpec((None, C, M), lambda g: (g, 0, 0)),
        ),
        compiler_params=pltpu.CompilerParams(
            dimension_semantics=("parallel",),
            vmem_limit_bytes=vmem_limit,
        ),
    )(xr, w1f, b1, w2f, b2)

    if nb == 1:
        return out_r
    # Undo the lane-dense layout: (G, C, nb*L) -> (N, C, L).
    return out_r.reshape(G, C, nb, L).transpose(0, 2, 1, 3).reshape(N, C, L)


# ------------------------- pure-JAX f32 reference ----------------------------
def _ref_conv1d(x, w, bias=None):
    N, C, L = x.shape
    xpad = jnp.pad(x, ((0, 0), (0, 0), (PAD, PAD)))
    windows = jnp.stack([xpad[:, :, k:k + L] for k in range(K)], axis=-1)  # (N,Ci,L,K)
    out = jnp.einsum("oik,nilk->nol", w, windows)
    if bias is not None:
        out = out + bias.reshape(1, -1, 1)
    return out


def _ref_bn(x, g, b, m, v):
    return (x - m.reshape(1, -1, 1)) / jnp.sqrt(v.reshape(1, -1, 1) + EPS) \
        * g.reshape(1, -1, 1) + b.reshape(1, -1, 1)


def _ref_forward(x, p):
    h = _ref_conv1d(x, p["w1"])
    h = _ref_bn(h, p["g1"], p["be1"], p["m1"], p["v1"])
    h = jnp.maximum(h, 0.0)
    y = _ref_conv1d(h, p["w2"], p["cb2"])
    y = _ref_bn(y, p["g2"], p["be2"], p["m2"], p["v2"])
    return x + y


# ----------------------------------- main -------------------------------------
if __name__ == "__main__":
    # Small shapes; L < 128 so the wrapper regroups samples into a lane-dense
    # slab (128/256 lanes depending on generation constraints).
    N, C, L = 4, 8, 64          # in_dim == out_dim == C (residual requires it)

    key = jax.random.PRNGKey(0)
    ks = jax.random.split(key, 12)

    params = {
        "w1": 0.1 * jax.random.normal(ks[0], (C, C, K), jnp.float32),
        "g1": 1.0 + 0.1 * jax.random.normal(ks[1], (C,), jnp.float32),
        "be1": 0.1 * jax.random.normal(ks[2], (C,), jnp.float32),
        "m1": 0.1 * jax.random.normal(ks[3], (C,), jnp.float32),
        "v1": 1.0 + 0.1 * jax.random.uniform(ks[4], (C,), jnp.float32),
        "w2": 0.1 * jax.random.normal(ks[5], (C, C, K), jnp.float32),
        "cb2": 0.1 * jax.random.normal(ks[6], (C,), jnp.float32),
        "g2": 1.0 + 0.1 * jax.random.normal(ks[7], (C,), jnp.float32),
        "be2": 0.1 * jax.random.normal(ks[8], (C,), jnp.float32),
        "m2": 0.1 * jax.random.normal(ks[9], (C,), jnp.float32),
        "v2": 1.0 + 0.1 * jax.random.uniform(ks[10], (C,), jnp.float32),
    }
    x = jax.random.normal(ks[11], (N, C, L), jnp.float32)

    out = residule_block_forward(x, params)
    out = jax.block_until_ready(out)

    ref = _ref_forward(x, params)
    # bf16 MXU operands (f32 accumulation) loosen the tolerance vs. the pure-f32
    # reference; elementwise/residual math is f32 in-kernel.
    np.testing.assert_allclose(np.asarray(out), np.asarray(ref),
                               rtol=3e-2, atol=3e-2)

    print("KERNEL_OK")
</pallas_src>

<mosaic_0001>
module attributes {stable_mosaic.version = 11 : i64} {
  func.func @_res_block_kernel(%arg0: i32, %arg1: memref<1x8x256xf32, #tpu.memory_space<vmem>>, %arg2: memref<8x40xbf16, #tpu.memory_space<vmem>>, %arg3: memref<8x1xf32, #tpu.memory_space<vmem>>, %arg4: memref<8x40xbf16, #tpu.memory_space<vmem>>, %arg5: memref<8x1xf32, #tpu.memory_space<vmem>>, %arg6: memref<1x8x256xf32, #tpu.memory_space<vmem>>) attributes {dimension_semantics = [#tpu.dimension_semantics<parallel>], iteration_bounds = array<i64: 1>, scalar_prefetch = 0 : i64, scratch_operands = 0 : i64, tpu.core_type = #tpu.core_type<tc>, window_params = [{transform_indices = @transform_0, window_bounds = array<i64: 1, 8, 256>}, {pipeline_mode = #tpu.pipeline_mode<synchronous>, transform_indices = @transform_1, window_bounds = array<i64: 8, 40>}, {pipeline_mode = #tpu.pipeline_mode<synchronous>, transform_indices = @transform_2, window_bounds = array<i64: 8, 1>}, {pipeline_mode = #tpu.pipeline_mode<synchronous>, transform_indices = @transform_3, window_bounds = array<i64: 8, 40>}, {pipeline_mode = #tpu.pipeline_mode<synchronous>, transform_indices = @transform_4, window_bounds = array<i64: 8, 1>}, {transform_indices = @transform_5, window_bounds = array<i64: 1, 8, 256>}]} {
    %c0 = arith.constant 0 : index
    %c0_0 = arith.constant 0 : index
    %c0_1 = arith.constant 0 : index
    %0 = vector.load %arg1[%c0, %c0_0, %c0_1] : memref<1x8x256xf32, #tpu.memory_space<vmem>>, vector<1x8x256xf32>
    %1 = vector.shape_cast %0 : vector<1x8x256xf32> to vector<8x256xf32>
    %2 = tpu.iota {dimensions = array<i32: 1>} : vector<1x256xi32>
    %c64_i32 = arith.constant 64 : i32
    %c0_i32 = arith.constant 0 : i32
    %3 = arith.cmpi eq, %c64_i32, %c0_i32 : i32
    %c1_i32 = arith.constant 1 : i32
    %4 = arith.select %3, %c1_i32, %c64_i32 : i32
    %5 = vector.broadcast %4 : i32 to vector<1x256xi32>
    %6 = arith.remsi %2, %5 : vector<1x256xi32>
    %c0_i32_2 = arith.constant 0 : i32
    %7 = vector.broadcast %c0_i32_2 : i32 to vector<1x256xi32>
    %8 = arith.cmpi ne, %6, %7 : vector<1x256xi32>
    %c0_i32_3 = arith.constant 0 : i32
    %9 = vector.broadcast %c0_i32_3 : i32 to vector<1x256xi32>
    %10 = arith.cmpi slt, %6, %9 : vector<1x256xi32>
    %c0_i32_4 = arith.constant 0 : i32
    %11 = arith.cmpi slt, %4, %c0_i32_4 : i32
    %12 = vector.broadcast %11 : i1 to vector<1x256xi1>
    %13 = vector.broadcast %12 : vector<1x256xi1> to vector<1x256xi1>
    %14 = arith.xori %10, %13 : vector<1x256xi1>
    %15 = arith.andi %14, %8 : vector<1x256xi1>
    %16 = vector.broadcast %4 : i32 to vector<1x256xi32>
    %17 = arith.addi %6, %16 : vector<1x256xi32>
    %18 = arith.select %15, %17, %6 : vector<1x256xi1>, vector<1x256xi32>
    %c-2_i32 = arith.constant -2 : i32
    %19 = vector.broadcast %c-2_i32 : i32 to vector<1x256xi32>
    %20 = arith.addi %18, %19 : vector<1x256xi32>
    %c0_i32_5 = arith.constant 0 : i32
    %21 = vector.broadcast %c0_i32_5 : i32 to vector<1x256xi32>
    %22 = arith.cmpi sge, %20, %21 : vector<1x256xi32>
    %c-2_i32_6 = arith.constant -2 : i32
    %23 = vector.broadcast %c-2_i32_6 : i32 to vector<1x256xi32>
    %24 = arith.addi %18, %23 : vector<1x256xi32>
    %c64_i32_7 = arith.constant 64 : i32
    %25 = vector.broadcast %c64_i32_7 : i32 to vector<1x256xi32>
    %26 = arith.cmpi slt, %24, %25 : vector<1x256xi32>
    %27 = arith.andi %22, %26 : vector<1x256xi1>
    %28 = arith.extui %27 : vector<1x256xi1> to vector<1x256xi32>
    %29 = arith.sitofp %28 : vector<1x256xi32> to vector<1x256xf32>
    %c-1_i32 = arith.constant -1 : i32
    %30 = vector.broadcast %c-1_i32 : i32 to vector<1x256xi32>
    %31 = arith.addi %18, %30 : vector<1x256xi32>
    %c0_i32_8 = arith.constant 0 : i32
    %32 = vector.broadcast %c0_i32_8 : i32 to vector<1x256xi32>
    %33 = arith.cmpi sge, %31, %32 : vector<1x256xi32>
    %c-1_i32_9 = arith.constant -1 : i32
    %34 = vector.broadcast %c-1_i32_9 : i32 to vector<1x256xi32>
    %35 = arith.addi %18, %34 : vector<1x256xi32>
    %c64_i32_10 = arith.constant 64 : i32
    %36 = vector.broadcast %c64_i32_10 : i32 to vector<1x256xi32>
    %37 = arith.cmpi slt, %35, %36 : vector<1x256xi32>
    %38 = arith.andi %33, %37 : vector<1x256xi1>
    %39 = arith.extui %38 : vector<1x256xi1> to vector<1x256xi32>
    %40 = arith.sitofp %39 : vector<1x256xi32> to vector<1x256xf32>
    %c1_i32_11 = arith.constant 1 : i32
    %41 = vector.broadcast %c1_i32_11 : i32 to vector<1x256xi32>
    %42 = arith.addi %18, %41 : vector<1x256xi32>
    %c0_i32_12 = arith.constant 0 : i32
    %43 = vector.broadcast %c0_i32_12 : i32 to vector<1x256xi32>
    %44 = arith.cmpi sge, %42, %43 : vector<1x256xi32>
    %c1_i32_13 = arith.constant 1 : i32
    %45 = vector.broadcast %c1_i32_13 : i32 to vector<1x256xi32>
    %46 = arith.addi %18, %45 : vector<1x256xi32>
    %c64_i32_14 = arith.constant 64 : i32
    %47 = vector.broadcast %c64_i32_14 : i32 to vector<1x256xi32>
    %48 = arith.cmpi slt, %46, %47 : vector<1x256xi32>
    %49 = arith.andi %44, %48 : vector<1x256xi1>
    %50 = arith.extui %49 : vector<1x256xi1> to vector<1x256xi32>
    %51 = arith.sitofp %50 : vector<1x256xi32> to vector<1x256xf32>
    %c2_i32 = arith.constant 2 : i32
    %52 = vector.broadcast %c2_i32 : i32 to vector<1x256xi32>
    %53 = arith.addi %18, %52 : vector<1x256xi32>
    %c0_i32_15 = arith.constant 0 : i32
    %54 = vector.broadcast %c0_i32_15 : i32 to vector<1x256xi32>
    %55 = arith.cmpi sge, %53, %54 : vector<1x256xi32>
    %c2_i32_16 = arith.constant 2 : i32
    %56 = vector.broadcast %c2_i32_16 : i32 to vector<1x256xi32>
    %57 = arith.addi %18, %56 : vector<1x256xi32>
    %c64_i32_17 = arith.constant 64 : i32
    %58 = vector.broadcast %c64_i32_17 : i32 to vector<1x256xi32>
    %59 = arith.cmpi slt, %57, %58 : vector<1x256xi32>
    %60 = arith.andi %55, %59 : vector<1x256xi1>
    %61 = arith.extui %60 : vector<1x256xi1> to vector<1x256xi32>
    %62 = arith.sitofp %61 : vector<1x256xi32> to vector<1x256xf32>
    %c0_18 = arith.constant 0 : index
    %c0_19 = arith.constant 0 : index
    %63 = vector.load %arg2[%c0_18, %c0_19] : memref<8x40xbf16, #tpu.memory_space<vmem>>, vector<8x40xbf16>
    %c2_i32_20 = arith.constant 2 : i32
    %64 = tpu.dynamic_rotate %1 by %c2_i32_20 dim 1 : vector<8x256xf32>, i32 -> vector<8x256xf32>
    %65 = vector.broadcast %29 : vector<1x256xf32> to vector<8x256xf32>
    %66 = arith.mulf %64, %65 : vector<8x256xf32>
    %c1_i32_21 = arith.constant 1 : i32
    %67 = tpu.dynamic_rotate %1 by %c1_i32_21 dim 1 : vector<8x256xf32>, i32 -> vector<8x256xf32>
    %68 = vector.broadcast %40 : vector<1x256xf32> to vector<8x256xf32>
    %69 = arith.mulf %67, %68 : vector<8x256xf32>
    %c255_i32 = arith.constant 255 : i32
    %70 = tpu.dynamic_rotate %1 by %c255_i32 dim 1 : vector<8x256xf32>, i32 -> vector<8x256xf32>
    %71 = vector.broadcast %51 : vector<1x256xf32> to vector<8x256xf32>
    %72 = arith.mulf %70, %71 : vector<8x256xf32>
    %c254_i32 = arith.constant 254 : i32
    %73 = tpu.dynamic_rotate %1 by %c254_i32 dim 1 : vector<8x256xf32>, i32 -> vector<8x256xf32>
    %74 = vector.broadcast %62 : vector<1x256xf32> to vector<8x256xf32>
    %75 = arith.mulf %73, %74 : vector<8x256xf32>
    %76 = tpu.concatenate %66, %69, %1, %72, %75 in 0 : vector<8x256xf32>, vector<8x256xf32>, vector<8x256xf32>, vector<8x256xf32>, vector<8x256xf32> -> vector<40x256xf32>
    %77 = arith.truncf %76 : vector<40x256xf32> to vector<40x256xbf16>
    %cst = arith.constant dense<0.000000e+00> : vector<8x256xf32>
    %78 = tpu.matmul %63, %77, %cst {dimension_numbers = #tpu.dot_dimension_numbers<[1], [0], [0], [1], [0, 0, 1, 1], [], []>} : vector<8x40xbf16>, vector<40x256xbf16>, vector<8x256xf32> -> vector<8x256xf32>
    %c0_22 = arith.constant 0 : index
    %c0_23 = arith.constant 0 : index
    %79 = vector.load %arg3[%c0_22, %c0_23] : memref<8x1xf32, #tpu.memory_space<vmem>>, vector<8x1xf32>
    %80 = vector.broadcast %79 : vector<8x1xf32> to vector<8x256xf32>
    %81 = arith.addf %78, %80 : vector<8x256xf32>
    %cst_24 = arith.constant 0.000000e+00 : f32
    %82 = vector.broadcast %cst_24 : f32 to vector<8x256xf32>
    %83 = arith.maximumf %81, %82 : vector<8x256xf32>
    %c0_25 = arith.constant 0 : index
    %c0_26 = arith.constant 0 : index
    %84 = vector.load %arg4[%c0_25, %c0_26] : memref<8x40xbf16, #tpu.memory_space<vmem>>, vector<8x40xbf16>
    %c2_i32_27 = arith.constant 2 : i32
    %85 = tpu.dynamic_rotate %83 by %c2_i32_27 dim 1 : vector<8x256xf32>, i32 -> vector<8x256xf32>
    %86 = vector.broadcast %29 : vector<1x256xf32> to vector<8x256xf32>
    %87 = arith.mulf %85, %86 : vector<8x256xf32>
    %c1_i32_28 = arith.constant 1 : i32
    %88 = tpu.dynamic_rotate %83 by %c1_i32_28 dim 1 : vector<8x256xf32>, i32 -> vector<8x256xf32>
    %89 = vector.broadcast %40 : vector<1x256xf32> to vector<8x256xf32>
    %90 = arith.mulf %88, %89 : vector<8x256xf32>
    %c255_i32_29 = arith.constant 255 : i32
    %91 = tpu.dynamic_rotate %83 by %c255_i32_29 dim 1 : vector<8x256xf32>, i32 -> vector<8x256xf32>
    %92 = vector.broadcast %51 : vector<1x256xf32> to vector<8x256xf32>
    %93 = arith.mulf %91, %92 : vector<8x256xf32>
    %c254_i32_30 = arith.constant 254 : i32
    %94 = tpu.dynamic_rotate %83 by %c254_i32_30 dim 1 : vector<8x256xf32>, i32 -> vector<8x256xf32>
    %95 = vector.broadcast %62 : vector<1x256xf32> to vector<8x256xf32>
    %96 = arith.mulf %94, %95 : vector<8x256xf32>
    %97 = tpu.concatenate %87, %90, %83, %93, %96 in 0 : vector<8x256xf32>, vector<8x256xf32>, vector<8x256xf32>, vector<8x256xf32>, vector<8x256xf32> -> vector<40x256xf32>
    %98 = arith.truncf %97 : vector<40x256xf32> to vector<40x256xbf16>
    %cst_31 = arith.constant dense<0.000000e+00> : vector<8x256xf32>
    %99 = tpu.matmul %84, %98, %cst_31 {dimension_numbers = #tpu.dot_dimension_numbers<[1], [0], [0], [1], [0, 0, 1, 1], [], []>} : vector<8x40xbf16>, vector<40x256xbf16>, vector<8x256xf32> -> vector<8x256xf32>
    %100 = arith.addf %1, %99 : vector<8x256xf32>
    %c0_32 = arith.constant 0 : index
    %c0_33 = arith.constant 0 : index
    %101 = vector.load %arg5[%c0_32, %c0_33] : memref<8x1xf32, #tpu.memory_space<vmem>>, vector<8x1xf32>
    %102 = vector.broadcast %101 : vector<8x1xf32> to vector<8x256xf32>
    %103 = arith.addf %100, %102 : vector<8x256xf32>
    %c0_34 = arith.constant 0 : index
    %c0_35 = arith.constant 0 : index
    %c0_36 = arith.constant 0 : index
    %104 = vector.load %arg6[%c0_34, %c0_35, %c0_36] : memref<1x8x256xf32, #tpu.memory_space<vmem>>, vector<1x8x256xf32>
    %105 = vector.shape_cast %104 : vector<1x8x256xf32> to vector<8x256xf32>
    %106 = vector.shape_cast %103 : vector<8x256xf32> to vector<1x8x256xf32>
    tpu.vector_store %arg6[%c0_34, %c0_35, %c0_36], %106 {strides = array<i32>} : memref<1x8x256xf32, #tpu.memory_space<vmem>>, vector<1x8x256xf32>,
    return
  }
  func.func @transform_0(%arg0: i32) -> (i32, i32, i32) {
    %c0_i32 = arith.constant 0 : i32
    %c0_i32_0 = arith.constant 0 : i32
    %c0_i32_1 = arith.constant 0 : i32
    return %arg0, %c0_i32, %c0_i32_0 : i32, i32, i32
  }
  func.func @transform_1(%arg0: i32) -> (i32, i32) {
    %c0_i32 = arith.constant 0 : i32
    %c0_i32_0 = arith.constant 0 : i32
    %c0_i32_1 = arith.constant 0 : i32
    return %c0_i32, %c0_i32_0 : i32, i32
  }
  func.func @transform_2(%arg0: i32) -> (i32, i32) {
    %c0_i32 = arith.constant 0 : i32
    %c0_i32_0 = arith.constant 0 : i32
    %c0_i32_1 = arith.constant 0 : i32
    return %c0_i32, %c0_i32_0 : i32, i32
  }
  func.func @transform_3(%arg0: i32) -> (i32, i32) {
    %c0_i32 = arith.constant 0 : i32
    %c0_i32_0 = arith.constant 0 : i32
    %c0_i32_1 = arith.constant 0 : i32
    return %c0_i32, %c0_i32_0 : i32, i32
  }
  func.func @transform_4(%arg0: i32) -> (i32, i32) {
    %c0_i32 = arith.constant 0 : i32
    %c0_i32_0 = arith.constant 0 : i32
    %c0_i32_1 = arith.constant 0 : i32
    return %c0_i32, %c0_i32_0 : i32, i32
  }
  func.func @transform_5(%arg0: i32) -> (i32, i32, i32) {
    %c0_i32 = arith.constant 0 : i32
    %c0_i32_0 = arith.constant 0 : i32
    %c0_i32_1 = arith.constant 0 : i32
    return %arg0, %c0_i32, %c0_i32_0 : i32, i32, i32
  }
}

</mosaic_0001>

<llo_original>
// kernel: tpu_custom_call.1
$region0: #{tpu_custom_call.1}
  #allocation0 [shape = 'u32[]', space=smem, size = 0x4, offset = 0x4, fixed_abs, tag = 'smem constant byte address 0x4 - core index']
  #allocation1 [shape = 'u32[144,128]{1,0:T(1,128)}', space=vmem, size = 0x12000, scoped, tag = 'internal scratch']
  %s0 = inlined_call_operand.hbm [shape: f32[1,8,256], index: 0, kind: input, shape index: {}]
  %s1 = inlined_call_operand.hbm [shape: bf16[8,40], index: 1, kind: input, shape index: {}]
  %s2 = inlined_call_operand.hbm [shape: f32[8,1], index: 2, kind: input, shape index: {}]
  %s3 = inlined_call_operand.hbm [shape: bf16[8,40], index: 3, kind: input, shape index: {}]
  %s4 = inlined_call_operand.hbm [shape: f32[8,1], index: 4, kind: input, shape index: {}]
  %s5 = inlined_call_operand.hbm [shape: f32[1,8,256], index: 5, kind: output, shape index: {}]
  %s6 = sld [smem:[#allocation0]]
  $region50: #{tpu_custom_call.1} parent=0
    _
  %s8 = ssub.s32 1, %s6
  %s9 = scalar_select 0, %s8, %s6
  $region1: #{tpu_custom_call.1} parent=0
    #allocation2 [shape = 'u8[8192]{0}', space=vmem, size = 0x2000, scoped, tag = 'input window, operand 0, single buffered']
    #allocation3 [shape = 's32[1]{0}', space=sflag, size = 0x4, scoped, tag = 'scoped memory for tpu_custom_call.1']
    #allocation4 [shape = 's32[1]{0}', space=sflag, size = 0x4, scoped, tag = 'scoped memory for tpu_custom_call.1']
    #allocation5 [shape = 'u8[2048]{0}', space=vmem, size = 0x800, scoped, tag = 'input window, operand 1, single buffered']
    #allocation6 [shape = 's32[1]{0}', space=sflag, size = 0x4, scoped, tag = 'scoped memory for tpu_custom_call.1']
    #allocation7 [shape = 'u8[4096]{0}', space=vmem, size = 0x1000, scoped, tag = 'input window, operand 2, single buffered']
    #allocation8 [shape = 'u8[2048]{0}', space=vmem, size = 0x800, scoped, tag = 'input window, operand 3, single buffered']
    #allocation9 [shape = 's32[1]{0}', space=sflag, size = 0x4, scoped, tag = 'scoped memory for tpu_custom_call.1']
    #allocation10 [shape = 'u8[4096]{0}', space=vmem, size = 0x1000, scoped, tag = 'input window, operand 4, single buffered']
    #allocation11 [shape = 'u8[8192]{0}', space=vmem, size = 0x2000, scoped, tag = 'output window, operand 0, single buffered']
    %10 = vsyncpa [#allocation3], 0
    %11 = vsyncpa [#allocation6], 0
    %12 = vsyncpa [#allocation9], 0
    %13 = vsyncpa [#allocation4], 0
    // Predicated region
    $region2: #{tpu_custom_call.1} parent=1 // pred_check
      _
    $region3: #{tpu_custom_call.1} parent=1 // pred_check_branch
      %15 = sbr.rel (0) target = $region5
    $region4: #{tpu_custom_call.1} parent=1 // pred_region
      %s17 = ssub.s32 256, 256
      %18 = vsyncadd [#allocation3], %s17
      %s20 = sshll.u32 [#allocation2], 4
      %s21 = int_to_ptr.vmem [resolvable:$true] %s20
      %23 = dma.hbm_to_vmem [thread:$0]  %s0, 256, %s21, [#allocation3]
    $region5: #{tpu_custom_call.1} parent=1 // pred_fallthru
      _
    // Predicated region
    $region6: #{tpu_custom_call.1} parent=1 // pred_check
      _
    $region7: #{tpu_custom_call.1} parent=1 // pred_check_branch
      %25 = sbr.rel (0) target = $region9
    $region8: #{tpu_custom_call.1} parent=1 // pred_region
      %s27 = ssub.s32 64, 64
      %28 = vsyncadd [#allocation6], %s27
      %s30 = sshll.u32 [#allocation5], 4
      %s31 = int_to_ptr.vmem [resolvable:$true] %s30
      %33 = dma.hbm_to_vmem [thread:$0]  %s1, 64, %s31, [#allocation6]
    $region9: #{tpu_custom_call.1} parent=1 // pred_fallthru
      _
    // Predicated region
    $region10: #{tpu_custom_call.1} parent=1 // pred_check
      _
    $region11: #{tpu_custom_call.1} parent=1 // pred_check_branch
      %35 = sbr.rel (0) target = $region13
    $region12: #{tpu_custom_call.1} parent=1 // pred_region
      %s37 = ssub.s32 128, 128
      %38 = vsyncadd [#allocation6], %s37
      %s40 = sshll.u32 [#allocation7], 4
      %s41 = int_to_ptr.vmem [resolvable:$true] %s40
      %43 = dma.hbm_to_vmem [thread:$0]  %s2, 128, %s41, [#allocation6]
    $region13: #{tpu_custom_call.1} parent=1 // pred_fallthru
      _
    // Predicated region
    $region14: #{tpu_custom_call.1} parent=1 // pred_check
      _
    $region15: #{tpu_custom_call.1} parent=1 // pred_check_branch
      %45 = sbr.rel (0) target = $region17
    $region16: #{tpu_custom_call.1} parent=1 // pred_region
      %s47 = ssub.s32 64, 64
      %48 = vsyncadd [#allocation9], %s47
      %s50 = sshll.u32 [#allocation8], 4
      %s51 = int_to_ptr.vmem [resolvable:$true] %s50
      %53 = dma.hbm_to_vmem [thread:$0]  %s3, 64, %s51, [#allocation9]
    $region17: #{tpu_custom_call.1} parent=1 // pred_fallthru
      _
    // Predicated region
    $region18: #{tpu_custom_call.1} parent=1 // pred_check
      _
    $region19: #{tpu_custom_call.1} parent=1 // pred_check_branch
      %55 = sbr.rel (0) target = $region21
    $region20: #{tpu_custom_call.1} parent=1 // pred_region
      %s57 = ssub.s32 128, 128
      %58 = vsyncadd [#allocation9], %s57
      %s60 = sshll.u32 [#allocation10], 4
      %s61 = int_to_ptr.vmem [resolvable:$true] %s60
      %63 = dma.hbm_to_vmem [thread:$0]  %s4, 128, %s61, [#allocation9]
    $region21: #{tpu_custom_call.1} parent=1 // pred_fallthru
      _
    // Predicated region
    $region22: #{tpu_custom_call.1} parent=1 // pred_check
      _
    $region23: #{tpu_custom_call.1} parent=1 // pred_check_branch
      %65 = sbr.rel (0) target = $region25
    $region24: #{tpu_custom_call.1} parent=1 // pred_region
      %66 = dma.done [#allocation3], 256
    $region25: #{tpu_custom_call.1} parent=1 // pred_fallthru
      _
    // Predicated region
    $region26: #{tpu_custom_call.1} parent=1 // pred_check
      _
    $region27: #{tpu_custom_call.1} parent=1 // pred_check_branch
      %68 = sbr.rel (0) target = $region29
    $region28: #{tpu_custom_call.1} parent=1 // pred_region
      %69 = dma.done [#allocation6], 64
    $region29: #{tpu_custom_call.1} parent=1 // pred_fallthru
      _
    // Predicated region
    $region30: #{tpu_custom_call.1} parent=1 // pred_check
      _
    $region31: #{tpu_custom_call.1} parent=1 // pred_check_branch
      %71 = sbr.rel (0) target = $region33
    $region32: #{tpu_custom_call.1} parent=1 // pred_region
      %72 = dma.done [#allocation6], 128
    $region33: #{tpu_custom_call.1} parent=1 // pred_fallthru
      _
    // Predicated region
    $region34: #{tpu_custom_call.1} parent=1 // pred_check
      _
    $region35: #{tpu_custom_call.1} parent=1 // pred_check_branch
      %74 = sbr.rel (0) target = $region37
    $region36: #{tpu_custom_call.1} parent=1 // pred_region
      %75 = dma.done [#allocation9], 64
    $region37: #{tpu_custom_call.1} parent=1 // pred_fallthru
      _
    // Predicated region
    $region38: #{tpu_custom_call.1} parent=1 // pred_check
      _
    $region39: #{tpu_custom_call.1} parent=1 // pred_check_branch
      %77 = sbr.rel (0) target = $region41
    $region40: #{tpu_custom_call.1} parent=1 // pred_region
      %78 = dma.done [#allocation9], 128
    $region41: #{tpu_custom_call.1} parent=1 // pred_fallthru
      _
    %v80 = vld [vmem:[#allocation2] sm:$0xff]
    %v81 = vld [vmem:[#allocation2 + $0x8] sm:$0xff]
    %v82 = vlaneseq
    %v83 = vand.u32 %v82, 127
    %v84 = vadd.s32 %v83, 128
    %vm85 = vcmp.lt.s32.totalorder %v83, 0
    %v86 = vsub.s32 0, %v83
    %v87 = vsel %vm85, %v86, %v83
    %v88 = vshrl.u32 %v87, 6
    %v89 = vand.u32 %v87, 63
    %v90 = vsub.s32 0, %v89
    %v91 = vsel %vm85, %v90, %v89
    %vm92 = vcmp.lt.s32.totalorder %v84, 0
    %v93 = vsub.s32 0, %v84
    %v94 = vsel %vm92, %v93, %v84
    %v95 = vshrl.u32 %v94, 6
    %v96 = vand.u32 %v94, 63
    %v97 = vsub.s32 0, %v96
    %v98 = vsel %vm92, %v97, %v96
    %vm99 = vcmp.ne.s32.totalorder %v91, 0
    %vm100 = vcmp.ne.s32.totalorder %v98, 0
    %vm101 = vcmp.lt.s32.totalorder %v91, 0
    %vm102 = vcmp.lt.s32.totalorder %v98, 0
    %vm103 = vmand %vm101, %vm99
    %vm104 = vmand %vm102, %vm100
    %v105 = vadd.s32 %v91, 64
    %v106 = vadd.s32 %v98, 64
    %v107 = vsel %vm103, %v105, %v91
    %v108 = vsel %vm104, %v106, %v98
    %v109 = vadd.s32 %v107, 4294967294
    %v110 = vadd.s32 %v108, 4294967294
    %vm111 = vcmp.ge.s32.totalorder %v109, 0
    %vm112 = vcmp.ge.s32.totalorder %v110, 0
    %vm113 = vcmp.lt.s32.totalorder %v109, 64
    %vm114 = vcmp.lt.s32.totalorder %v110, 64
    %vm115 = vmand %vm111, %vm113
    %vm116 = vmand %vm112, %vm114
    %v117 = vsel %vm115, 1, 0
    %v118 = vsel %vm116, 1, 0
    %v119 = vcvt.s32.f32 %v117
    %v120 = vcvt.s32.f32 %v118
    %v121 = vadd.s32 %v107, 4294967295
    %v122 = vadd.s32 %v108, 4294967295
    %vm123 = vcmp.ge.s32.totalorder %v121, 0
    %vm124 = vcmp.ge.s32.totalorder %v122, 0
    %vm125 = vcmp.lt.s32.totalorder %v121, 64
    %vm126 = vcmp.lt.s32.totalorder %v122, 64
    %vm127 = vmand %vm123, %vm125
    %vm128 = vmand %vm124, %vm126
    %v129 = vsel %vm127, 1, 0
    %v130 = vsel %vm128, 1, 0
    %v131 = vcvt.s32.f32 %v129
    %v132 = vcvt.s32.f32 %v130
    %v133 = vadd.s32 %v107, 1
    %v134 = vadd.s32 %v108, 1
    %vm135 = vcmp.ge.s32.totalorder %v133, 0
    %vm136 = vcmp.ge.s32.totalorder %v134, 0
    %vm137 = vcmp.lt.s32.totalorder %v133, 64
    %vm138 = vcmp.lt.s32.totalorder %v134, 64
    %vm139 = vmand %vm135, %vm137
    %vm140 = vmand %vm136, %vm138
    %v141 = vsel %vm139, 1, 0
    %v142 = vsel %vm140, 1, 0
    %v143 = vcvt.s32.f32 %v141
    %v144 = vcvt.s32.f32 %v142
    %v145 = vadd.s32 %v107, 2
    %v146 = vadd.s32 %v108, 2
    %vm147 = vcmp.ge.s32.totalorder %v145, 0
    %vm148 = vcmp.ge.s32.totalorder %v146, 0
    %vm149 = vcmp.lt.s32.totalorder %v145, 64
    %vm150 = vcmp.lt.s32.totalorder %v146, 64
    %vm151 = vmand %vm147, %vm149
    %vm152 = vmand %vm148, %vm150
    %v153 = vsel %vm151, 1, 0
    %v154 = vsel %vm152, 1, 0
    %v155 = vcvt.s32.f32 %v153
    %v156 = vcvt.s32.f32 %v154
    %v157 = vld [vmem:[#allocation5] sm:$0xf]
    %158 = vrot.lane.b32.xlu0 %v80, 2
    %v159 = vpop.permute.xlu0 %158
    %160 = vrot.lane.b32.xlu0 %v81, 2
    %v161 = vpop.permute.xlu0 %160
    %vm162 = vcmp.lt.s32.totalorder %v83, 2
    %v163 = vsel %vm162, %v159, %v161
    %v164 = vsel %vm162, %v161, %v159
    %v165 = vmul.f32 %v164, %v119
    %v166 = vmul.f32 %v163, %v120
    %167 = vrot.lane.b32.xlu0 %v80, 1
    %v168 = vpop.permute.xlu0 %167
    %169 = vrot.lane.b32.xlu0 %v81, 1
    %v170 = vpop.permute.xlu0 %169
    %vm171 = vcmp.lt.s32.totalorder %v83, 1
    %v172 = vsel %vm171, %v168, %v170
    %v173 = vsel %vm171, %v170, %v168
    %v174 = vmul.f32 %v173, %v131
    %v175 = vmul.f32 %v172, %v132
    %176 = vrot.lane.b32.xlu0 %v80, 127
    %v177 = vpop.permute.xlu0 %176
    %178 = vrot.lane.b32.xlu0 %v81, 127
    %v179 = vpop.permute.xlu0 %178
    %vm180 = vcmp.lt.s32.totalorder %v83, 127
    %v181 = vsel %vm180, %v177, %v179
    %v182 = vsel %vm180, %v179, %v177
    %v183 = vmul.f32 %v181, %v143
    %v184 = vmul.f32 %v182, %v144
    %185 = vrot.lane.b32.xlu0 %v80, 126
    %v186 = vpop.permute.xlu0 %185
    %187 = vrot.lane.b32.xlu0 %v81, 126
    %v188 = vpop.permute.xlu0 %187
    %vm189 = vcmp.lt.s32.totalorder %v83, 126
    %v190 = vsel %vm189, %v186, %v188
    %v191 = vsel %vm189, %v188, %v186
    %v192 = vmul.f32 %v190, %v155
    %v193 = vmul.f32 %v191, %v156
    %v194 = vpack.c.bf16 %v174, %v165
    %v195 = vpack.c.bf16 %v175, %v166
    %v196 = vpack.c.bf16 %v183, %v80
    %v197 = vpack.c.bf16 %v184, %v81
    %v198 = vpack.c.bf16 %v192, %v192
    %v199 = vpack.c.bf16 %v193, %v193
    %v200 = vld [vmem:[#allocation7] sm:$0xff]
    %202 = vset.pattern.permute.xlu0 0
    %203 = vperm.xlu0 %202, %v200
    %v204 = vpop.permute.xlu0 %203
    %vm206 = vcmask 326656
    %v208 = vsel %vm206, %v157, 0
    %vm210 = vcmask 1043456
    %v212 = vsel %vm210, %v198, 0
    %v215 = vsel %vm210, %v199, 0
    %217 = vmatprep.subr.bf16.mxu0 %v195
    %218 = vmatpush1.bf16.msra.mxu0 %v194
    %219 = vmatprep.subr.bf16.mxu0 %v197
    %220 = vmatpush1.bf16.msra.mxu0 %v196
    %221 = vmatprep.subr.bf16.mxu0 %v215
    %222 = vmatpush1.bf16.msra.mxu0 %v212
    %223 = vmatprep.subr.bf16.mxu0 0
    %224 = vmatpush1.bf16.msra.mxu0 0
    %225 = vmatprep.subr.bf16.mxu0 0
    %226 = vmatpush1.bf16.msra.mxu0 0
    %227 = vmatprep.subr.bf16.mxu0 0
    %228 = vmatpush1.bf16.msra.mxu0 0
    %229 = vmatprep.subr.bf16.mxu0 0
    %230 = vmatpush1.bf16.msra.mxu0 0
    %231 = vmatprep.subr.bf16.mxu0 0
    %232 = vmatpush1.bf16.msra.mxu0 0
    %233 = vmatprep.subr.bf16.mxu0 0
    %234 = vmatpush1.bf16.msra.mxu0 0
    %235 = vmatprep.subr.bf16.mxu0 0
    %236 = vmatpush1.bf16.msra.mxu0 0
    %237 = vmatprep.subr.bf16.mxu0 0
    %238 = vmatpush1.bf16.msra.mxu0 0
    %239 = vmatprep.subr.bf16.mxu0 0
    %240 = vmatpush1.bf16.msra.mxu0 0
    %241 = vmatprep.subr.bf16.mxu0 0
    %242 = vmatpush1.bf16.msra.mxu0 0
    %243 = vmatprep.subr.bf16.mxu0 0
    %244 = vmatpush1.bf16.msra.mxu0 0
    %245 = vmatprep.subr.bf16.mxu0 0
    %246 = vmatpush1.bf16.msra.mxu0 0
    %247 = vmatprep.subr.bf16.mxu0 0
    %248 = vmatpush1.bf16.msra.mxu0 0
    %249 = vmatprep.mubr.bf16.mxu0 0
    %250 = vmatmul.mubr.bf16.gmra.mrb[0].mxu0 %v208
    %v251 = vpop.f32.mrb[0].mxu0
    %v252 = vadd.f32 %v204, %v251
    %v253 = vpop.f32.mrb[0].mxu0
    %v254 = vadd.f32 %v204, %v253
    %v255 = vpop.f32.mrb[0].mxu0
    %v256 = vpop.f32.mrb[0].mxu0
    %257 = vdwg.mxu0
    %v258 = vmax.f32 %v252, 0.0
    %v259 = vmax.f32 %v254, 0.0
    %v260 = vld [vmem:[#allocation8] sm:$0xf]
    %261 = vrot.lane.b32.xlu0 %v258, 2
    %v262 = vpop.permute.xlu0 %261
    %263 = vrot.lane.b32.xlu0 %v259, 2
    %v264 = vpop.permute.xlu0 %263
    %v265 = vsel %vm162, %v262, %v264
    %v266 = vsel %vm162, %v264, %v262
    %v267 = vmul.f32 %v266, %v119
    %v268 = vmul.f32 %v265, %v120
    %269 = vrot.lane.b32.xlu0 %v258, 1
    %v270 = vpop.permute.xlu0 %269
    %271 = vrot.lane.b32.xlu0 %v259, 1
    %v272 = vpop.permute.xlu0 %271
    %v273 = vsel %vm171, %v270, %v272
    %v274 = vsel %vm171, %v272, %v270
    %v275 = vmul.f32 %v274, %v131
    %v276 = vmul.f32 %v273, %v132
    %277 = vrot.lane.b32.xlu0 %v258, 127
    %v278 = vpop.permute.xlu0 %277
    %279 = vrot.lane.b32.xlu0 %v259, 127
    %v280 = vpop.permute.xlu0 %279
    %v281 = vsel %vm180, %v278, %v280
    %v282 = vsel %vm180, %v280, %v278
    %v283 = vmul.f32 %v281, %v143
    %v284 = vmul.f32 %v282, %v144
    %285 = vrot.lane.b32.xlu0 %v258, 126
    %v286 = vpop.permute.xlu0 %285
    %287 = vrot.lane.b32.xlu0 %v259, 126
    %v288 = vpop.permute.xlu0 %287
    %v289 = vsel %vm189, %v286, %v288
    %v290 = vsel %vm189, %v288, %v286
    %v291 = vmul.f32 %v289, %v155
    %v292 = vmul.f32 %v290, %v156
    %v293 = vpack.c.bf16 %v275, %v267
    %v294 = vpack.c.bf16 %v276, %v268
    %v295 = vpack.c.bf16 %v283, %v258
    %v296 = vpack.c.bf16 %v284, %v259
    %v297 = vpack.c.bf16 %v291, %v291
    %v298 = vpack.c.bf16 %v292, %v292
    %v300 = vsel %vm206, %v260, 0
    %v303 = vsel %vm210, %v297, 0
    %v306 = vsel %vm210, %v298, 0
    %308 = vmatprep.subr.bf16.mxu0 %v294
    %309 = vmatpush1.bf16.msra.mxu0 %v293
    %310 = vmatprep.subr.bf16.mxu0 %v296
    %311 = vmatpush1.bf16.msra.mxu0 %v295
    %312 = vmatprep.subr.bf16.mxu0 %v306
    %313 = vmatpush1.bf16.msra.mxu0 %v303
    %314 = vmatprep.subr.bf16.mxu0 0
    %315 = vmatpush1.bf16.msra.mxu0 0
    %316 = vmatprep.subr.bf16.mxu0 0
    %317 = vmatpush1.bf16.msra.mxu0 0
    %318 = vmatprep.subr.bf16.mxu0 0
    %319 = vmatpush1.bf16.msra.mxu0 0
    %320 = vmatprep.subr.bf16.mxu0 0
    %321 = vmatpush1.bf16.msra.mxu0 0
    %322 = vmatprep.subr.bf16.mxu0 0
    %323 = vmatpush1.bf16.msra.mxu0 0
    %324 = vmatprep.subr.bf16.mxu0 0
    %325 = vmatpush1.bf16.msra.mxu0 0
    %326 = vmatprep.subr.bf16.mxu0 0
    %327 = vmatpush1.bf16.msra.mxu0 0
    %328 = vmatprep.subr.bf16.mxu0 0
    %329 = vmatpush1.bf16.msra.mxu0 0
    %330 = vmatprep.subr.bf16.mxu0 0
    %331 = vmatpush1.bf16.msra.mxu0 0
    %332 = vmatprep.subr.bf16.mxu0 0
    %333 = vmatpush1.bf16.msra.mxu0 0
    %334 = vmatprep.subr.bf16.mxu0 0
    %335 = vmatpush1.bf16.msra.mxu0 0
    %336 = vmatprep.subr.bf16.mxu0 0
    %337 = vmatpush1.bf16.msra.mxu0 0
    %338 = vmatprep.subr.bf16.mxu0 0
    %339 = vmatpush1.bf16.msra.mxu0 0
    %340 = vmatprep.mubr.bf16.mxu0 0
    %341 = vmatmul.mubr.bf16.gmra.mrb[0].mxu0 %v300
    %v342 = vpop.f32.mrb[0].mxu0
    %v343 = vadd.f32 0.0, %v342
    %v344 = vpop.f32.mrb[0].mxu0
    %v345 = vadd.f32 0.0, %v344
    %v346 = vpop.f32.mrb[0].mxu0
    %v347 = vpop.f32.mrb[0].mxu0
    %348 = vdwg.mxu0
    %v349 = vadd.f32 %v80, %v343
    %v350 = vadd.f32 %v81, %v345
    %v351 = vld [vmem:[#allocation10] sm:$0xff]
    %353 = vset.pattern.permute.xlu0 0
    %354 = vperm.xlu0 %353, %v351
    %v355 = vpop.permute.xlu0 %354
    %v357 = vadd.f32 %v349, %v355
    %v358 = vadd.f32 %v350, %v355
    %359 = vst [vmem:[#allocation11] sm:$0xff] %v357
    %360 = vst [vmem:[#allocation11 + $0x8] sm:$0xff] %v358
    // Predicated region
    $region42: #{tpu_custom_call.1} parent=1 // pred_check
      _
    $region43: #{tpu_custom_call.1} parent=1 // pred_check_branch
      %362 = sbr.rel (0) target = $region45
    $region44: #{tpu_custom_call.1} parent=1 // pred_region
      %s364 = ssub.s32 256, 256
      %365 = vsyncadd [#allocation4], %s364
      %s367 = sshll.u32 [#allocation11], 4
      %s368 = int_to_ptr.vmem [resolvable:$true] %s367
      %370 = dma.vmem_to_hbm [thread:$0]  %s368, 256, %s5, [#allocation4]
    $region45: #{tpu_custom_call.1} parent=1 // pred_fallthru
      _
    // Predicated region
    $region46: #{tpu_custom_call.1} parent=1 // pred_check
      _
    $region47: #{tpu_custom_call.1} parent=1 // pred_check_branch
      %372 = sbr.rel (0) target = $region49
    $region48: #{tpu_custom_call.1} parent=1 // pred_region
      %373 = dma.done [#allocation4], 256
    $region49: #{tpu_custom_call.1} parent=1 // pred_fallthru
      _
    %374 = vsyncpa [#allocation3], 1
    %375 = vsyncpa [#allocation6], 1
    %376 = vsyncpa [#allocation9], 1
    %377 = vsyncpa [#allocation4], 1

</llo_original>
